<compile_context>
chip_gen: v7x
topology: tpu7x:2x2x1
jax: 0.10.0
libtpu: 0.0.40
codegen_flags: <defaults>
</compile_context>

<pallas_src>
import jax
import jax.numpy as jnp
from jax.experimental import pallas as pl
from jax.experimental.pallas import tpu as pltpu

BN_EPS = 1e-5
_LANES = 128                    # TPU vreg lane width
_OUT_LANES = 128                # lane-dense output slab width (col 0 = result)
_VMEM_LIMIT = 32 * 1024 * 1024  # safe on v5e/v6e/v7x; re-derive block_b for v7x


def _round_up(n, m):
    return ((n + m - 1) // m) * m


# ---------------------------------------------------------------------------
# Pass 1: h = relu(x @ W1 + b1) per batch tile, plus batch-statistic
# accumulators sum(h) and sum(h*h) (resident output blocks, "arbitrary" axis).
# ---------------------------------------------------------------------------
def _make_pass1_kernel(block_b, b_valid, needs_mask):
    def kernel(x_ref, w1_ref, b1_ref, h_ref, s1_ref, s2_ref):
        i = pl.program_id(0)

        h = jnp.dot(x_ref[...], w1_ref[...], preferred_element_type=jnp.float32)
        h = jnp.maximum(h + b1_ref[...], 0.0)

        if needs_mask:
            # Zero padded batch rows so they don't pollute the batch statistics.
            row = i * block_b + jax.lax.broadcasted_iota(
                jnp.int32, (block_b, 1), 0)
            h = jnp.where(row < b_valid, h, 0.0)

        h_ref[...] = h

        @pl.when(i == 0)
        def _init():
            s1_ref[...] = jnp.zeros_like(s1_ref)
            s2_ref[...] = jnp.zeros_like(s2_ref)

        s1_ref[...] += jnp.sum(h, axis=0, keepdims=True)
        s2_ref[...] += jnp.sum(h * h, axis=0, keepdims=True)

    return kernel


# ---------------------------------------------------------------------------
# Pass 2: logits = h @ a + c with BN + Linear2 folded into scale `a` and offset
# row `cvec` (sum(cvec) == c).  Matvec done as VPU multiply + lane reduction
# (no degenerate 1-column MXU matmul); sigmoid via tanh on the EUP; output
# stored lane-dense into a [block_b, 128] slab (unmasked vst).
# ---------------------------------------------------------------------------
def _pass2_kernel(h_ref, a_ref, cv_ref, o_ref):
    z = jnp.sum(h_ref[...] * a_ref[...] + cv_ref[...], axis=-1, keepdims=True)
    y = 0.5 * (jnp.tanh(0.5 * z) + 1.0)          # stable sigmoid, EUP tanh
    o_ref[...] = jnp.broadcast_to(y, o_ref.shape)


def discriminator_forward(x, w1, b1, gamma, beta, w2, b2, *, block_b=256):
    """x: [B, D_in] -> [B, 1] float32 (BatchNorm in training mode)."""
    assert block_b % 8 == 0, "block_b must be a multiple of 8 sublanes"
    B, D = x.shape
    H = w1.shape[1]
    f32 = jnp.float32

    Dp = _round_up(D, _LANES)                 # pad features to full lanes
    Hp = _round_up(H, _LANES)
    Bt = min(_round_up(B, 8), block_b)        # batch tile (multiple of 8)
    Bp = _round_up(B, Bt)
    nb = Bp // Bt

    # Zero-pad features / batch; padded hidden units carry gamma=beta=w2=0 so
    # they contribute exactly 0 to the logits.
    xp = jnp.zeros((Bp, Dp), f32).at[:B, :D].set(x.astype(f32))
    w1p = jnp.zeros((Dp, Hp), f32).at[:D, :H].set(w1.astype(f32))
    b1p = jnp.zeros((1, Hp), f32).at[0, :H].set(b1.astype(f32))

    pass1 = _make_pass1_kernel(Bt, B, needs_mask=(Bp != B))
    h, s1, s2 = pl.pallas_call(
        pass1,
        out_shape=(
            jax.ShapeDtypeStruct((Bp, Hp), f32),   # h = relu(x@W1 + b1)
            jax.ShapeDtypeStruct((1, Hp), f32),    # sum(h)   over batch
            jax.ShapeDtypeStruct((1, Hp), f32),    # sum(h*h) over batch
        ),
        grid=(nb,),
        in_specs=[
            pl.BlockSpec((Bt, Dp), lambda i: (i, 0)),
            pl.BlockSpec((Dp, Hp), lambda i: (0, 0)),
            pl.BlockSpec((1, Hp), lambda i: (0, 0)),
        ],
        out_specs=(
            pl.BlockSpec((Bt, Hp), lambda i: (i, 0)),
            pl.BlockSpec((1, Hp), lambda i: (0, 0)),
            pl.BlockSpec((1, Hp), lambda i: (0, 0)),
        ),
        compiler_params=pltpu.CompilerParams(
            dimension_semantics=("arbitrary",),    # stats accumulate across tiles
            vmem_limit_bytes=_VMEM_LIMIT,
        ),
    )(xp, w1p, b1p)

    # Fold BatchNorm (batch stats, biased variance) + Linear2 into per-feature
    # scale/offset.  O(H) work, done once between the tiled kernels.
    mean = s1 / B
    var = s2 / B - mean * mean                   # biased variance (BN training)
    inv = jax.lax.rsqrt(var + BN_EPS)
    gp = jnp.zeros((1, Hp), f32).at[0, :H].set(gamma.astype(f32))
    bp = jnp.zeros((1, Hp), f32).at[0, :H].set(beta.astype(f32))
    w2r = jnp.zeros((1, Hp), f32).at[0, :H].set(w2.reshape(-1).astype(f32))
    scale = gp * inv                             # gamma / sqrt(var + eps)
    a = scale * w2r                              # [1, Hp]
    cvec = w2r * (bp - mean * scale)             # [1, Hp]; sum == c - b2
    cvec = cvec.at[0, 0].add(b2.reshape(()).astype(f32))

    out = pl.pallas_call(
        _pass2_kernel,
        out_shape=jax.ShapeDtypeStruct((Bp, _OUT_LANES), f32),
        grid=(nb,),
        in_specs=[
            pl.BlockSpec((Bt, Hp), lambda i: (i, 0)),
            pl.BlockSpec((1, Hp), lambda i: (0, 0)),
            pl.BlockSpec((1, Hp), lambda i: (0, 0)),
        ],
        out_specs=pl.BlockSpec((Bt, _OUT_LANES), lambda i: (i, 0)),
        compiler_params=pltpu.CompilerParams(
            dimension_semantics=("parallel",),     # independent batch tiles
            vmem_limit_bytes=_VMEM_LIMIT,
        ),
    )(h, a, cvec)

    return out[:B, :1]


def discriminator_reference(x, w1, b1, gamma, beta, w2, b2):
    hi = jax.lax.Precision.HIGHEST
    h = jnp.maximum(jnp.dot(x, w1, precision=hi) + b1, 0.0)
    mean = jnp.mean(h, axis=0, keepdims=True)
    var = jnp.mean((h - mean) ** 2, axis=0, keepdims=True)
    hn = (h - mean) / jnp.sqrt(var + BN_EPS) * gamma + beta
    return jax.nn.sigmoid(jnp.dot(hn, w2, precision=hi) + b2)


if __name__ == "__main__":
    # Small, module-consistent shapes.  block_b=8 gives 3 batch tiles and a
    # padded last tile, exercising tiling, accumulation and the batch mask.
    B, D_IN, HID = 20, 32, 32

    key = jax.random.PRNGKey(0)
    kx, kw1, kb1, kw2, kb2 = jax.random.split(key, 5)

    x = jax.random.normal(kx, (B, D_IN), dtype=jnp.float32)

    lim1 = 1.0 / jnp.sqrt(D_IN)
    w1 = jax.random.uniform(kw1, (D_IN, HID), jnp.float32, -lim1, lim1)
    b1 = jax.random.uniform(kb1, (HID,), jnp.float32, -lim1, lim1)
    lim2 = 1.0 / jnp.sqrt(HID)
    w2 = jax.random.uniform(kw2, (HID, 1), jnp.float32, -lim2, lim2)
    b2 = jax.random.uniform(kb2, (1,), jnp.float32, -lim2, lim2)
    gamma = jnp.ones((HID,), jnp.float32)   # BatchNorm1d default affine
    beta = jnp.zeros((HID,), jnp.float32)

    y = discriminator_forward(x, w1, b1, gamma, beta, w2, b2, block_b=8)
    y = jax.block_until_ready(y)

    y_ref = discriminator_reference(x, w1, b1, gamma, beta, w2, b2)
    assert y.shape == (B, 1)
    assert jnp.allclose(y, y_ref, rtol=1e-5, atol=1e-5), "mismatch vs reference"

    print("KERNEL_OK")
</pallas_src>

<mosaic_0001>
module attributes {stable_mosaic.version = 11 : i64} {
  func.func @kernel(%arg0: i32, %arg1: memref<8x128xf32, #tpu.memory_space<vmem>>, %arg2: memref<128x128xf32, #tpu.memory_space<vmem>>, %arg3: memref<1x128xf32, #tpu.memory_space<vmem>>, %arg4: memref<8x128xf32, #tpu.memory_space<vmem>>, %arg5: memref<1x128xf32, #tpu.memory_space<vmem>>, %arg6: memref<1x128xf32, #tpu.memory_space<vmem>>) attributes {dimension_semantics = [#tpu.dimension_semantics<arbitrary>], iteration_bounds = array<i64: 3>, scalar_prefetch = 0 : i64, scratch_operands = 0 : i64, tpu.core_type = #tpu.core_type<tc>, window_params = [{transform_indices = @transform_0, window_bounds = array<i64: 8, 128>}, {pipeline_mode = #tpu.pipeline_mode<synchronous>, transform_indices = @transform_1, window_bounds = array<i64: 128, 128>}, {pipeline_mode = #tpu.pipeline_mode<synchronous>, transform_indices = @transform_2, window_bounds = array<i64: 1, 128>}, {transform_indices = @transform_3, window_bounds = array<i64: 8, 128>}, {pipeline_mode = #tpu.pipeline_mode<synchronous>, transform_indices = @transform_4, window_bounds = array<i64: 1, 128>}, {pipeline_mode = #tpu.pipeline_mode<synchronous>, transform_indices = @transform_5, window_bounds = array<i64: 1, 128>}]} {
    %c0 = arith.constant 0 : index
    %c0_0 = arith.constant 0 : index
    %0 = vector.load %arg1[%c0, %c0_0] : memref<8x128xf32, #tpu.memory_space<vmem>>, vector<8x128xf32>
    %c0_1 = arith.constant 0 : index
    %c0_2 = arith.constant 0 : index
    %1 = vector.load %arg2[%c0_1, %c0_2] : memref<128x128xf32, #tpu.memory_space<vmem>>, vector<128x128xf32>
    %cst = arith.constant dense<0.000000e+00> : vector<8x128xf32>
    %2 = tpu.matmul %0, %1, %cst {dimension_numbers = #tpu.dot_dimension_numbers<[1], [0], [0], [1], [0, 0, 1, 1], [], []>} : vector<8x128xf32>, vector<128x128xf32>, vector<8x128xf32> -> vector<8x128xf32>
    %c0_3 = arith.constant 0 : index
    %c0_4 = arith.constant 0 : index
    %3 = vector.load %arg3[%c0_3, %c0_4] : memref<1x128xf32, #tpu.memory_space<vmem>>, vector<1x128xf32>
    %4 = vector.broadcast %3 : vector<1x128xf32> to vector<8x128xf32>
    %5 = arith.addf %2, %4 : vector<8x128xf32>
    %cst_5 = arith.constant 0.000000e+00 : f32
    %6 = vector.broadcast %cst_5 : f32 to vector<8x128xf32>
    %7 = arith.maximumf %5, %6 : vector<8x128xf32>
    %c8_i32 = arith.constant 8 : i32
    %8 = arith.muli %arg0, %c8_i32 : i32
    %9 = tpu.iota {dimensions = array<i32: 0>} : vector<8x1xi32>
    %10 = vector.broadcast %8 : i32 to vector<8x1xi32>
    %11 = arith.addi %10, %9 : vector<8x1xi32>
    %c20_i32 = arith.constant 20 : i32
    %12 = vector.broadcast %c20_i32 : i32 to vector<8x1xi32>
    %13 = arith.cmpi slt, %11, %12 : vector<8x1xi32>
    %cst_6 = arith.constant 0.000000e+00 : f32
    %14 = vector.shape_cast %13 : vector<8x1xi1> to vector<8x1xi1>
    %15 = vector.broadcast %14 : vector<8x1xi1> to vector<8x128xi1>
    %16 = vector.broadcast %cst_6 : f32 to vector<8x128xf32>
    %17 = arith.select %15, %7, %16 : vector<8x128xi1>, vector<8x128xf32>
    %c0_7 = arith.constant 0 : index
    %c0_8 = arith.constant 0 : index
    %18 = vector.load %arg4[%c0_7, %c0_8] : memref<8x128xf32, #tpu.memory_space<vmem>>, vector<8x128xf32>
    tpu.vector_store %arg4[%c0_7, %c0_8], %17 {strides = array<i32>} : memref<8x128xf32, #tpu.memory_space<vmem>>, vector<8x128xf32>,
    %c0_i32 = arith.constant 0 : i32
    %19 = arith.cmpi eq, %arg0, %c0_i32 : i32
    %20 = arith.extui %19 : i1 to i32
    %c0_i32_9 = arith.constant 0 : i32
    %21 = arith.cmpi ne, %20, %c0_i32_9 : i32
    scf.if %21 {
      %cst_20 = arith.constant 0.000000e+00 : f32
      %33 = vector.broadcast %cst_20 : f32 to vector<1x128xf32>
      %c0_21 = arith.constant 0 : index
      %c0_22 = arith.constant 0 : index
      %34 = vector.load %arg5[%c0_21, %c0_22] : memref<1x128xf32, #tpu.memory_space<vmem>>, vector<1x128xf32>
      tpu.vector_store %arg5[%c0_21, %c0_22], %33 {strides = array<i32>} : memref<1x128xf32, #tpu.memory_space<vmem>>, vector<1x128xf32>,
      %cst_23 = arith.constant 0.000000e+00 : f32
      %35 = vector.broadcast %cst_23 : f32 to vector<1x128xf32>
      %c0_24 = arith.constant 0 : index
      %c0_25 = arith.constant 0 : index
      %36 = vector.load %arg6[%c0_24, %c0_25] : memref<1x128xf32, #tpu.memory_space<vmem>>, vector<1x128xf32>
      tpu.vector_store %arg6[%c0_24, %c0_25], %35 {strides = array<i32>} : memref<1x128xf32, #tpu.memory_space<vmem>>, vector<1x128xf32>,
    } else {
    }
    %c0_10 = arith.constant 0 : index
    %c0_11 = arith.constant 0 : index
    %22 = vector.load %arg5[%c0_10, %c0_11] : memref<1x128xf32, #tpu.memory_space<vmem>>, vector<1x128xf32>
    %cst_12 = arith.constant dense<0.000000e+00> : vector<128xf32>
    %23 = vector.multi_reduction <add>, %17, %cst_12 [0] : vector<8x128xf32> to vector<128xf32>
    %24 = vector.shape_cast %23 : vector<128xf32> to vector<1x128xf32>
    %25 = arith.addf %22, %24 : vector<1x128xf32>
    %c0_13 = arith.constant 0 : index
    %c0_14 = arith.constant 0 : index
    %26 = vector.load %arg5[%c0_13, %c0_14] : memref<1x128xf32, #tpu.memory_space<vmem>>, vector<1x128xf32>
    tpu.vector_store %arg5[%c0_13, %c0_14], %25 {strides = array<i32>} : memref<1x128xf32, #tpu.memory_space<vmem>>, vector<1x128xf32>,
    %c0_15 = arith.constant 0 : index
    %c0_16 = arith.constant 0 : index
    %27 = vector.load %arg6[%c0_15, %c0_16] : memref<1x128xf32, #tpu.memory_space<vmem>>, vector<1x128xf32>
    %28 = arith.mulf %17, %17 : vector<8x128xf32>
    %cst_17 = arith.constant dense<0.000000e+00> : vector<128xf32>
    %29 = vector.multi_reduction <add>, %28, %cst_17 [0] : vector<8x128xf32> to vector<128xf32>
    %30 = vector.shape_cast %29 : vector<128xf32> to vector<1x128xf32>
    %31 = arith.addf %27, %30 : vector<1x128xf32>
    %c0_18 = arith.constant 0 : index
    %c0_19 = arith.constant 0 : index
    %32 = vector.load %arg6[%c0_18, %c0_19] : memref<1x128xf32, #tpu.memory_space<vmem>>, vector<1x128xf32>
    tpu.vector_store %arg6[%c0_18, %c0_19], %31 {strides = array<i32>} : memref<1x128xf32, #tpu.memory_space<vmem>>, vector<1x128xf32>,
    return
  }
  func.func @transform_0(%arg0: i32) -> (i32, i32) {
    %c0_i32 = arith.constant 0 : i32
    %c0_i32_0 = arith.constant 0 : i32
    return %arg0, %c0_i32 : i32, i32
  }
  func.func @transform_1(%arg0: i32) -> (i32, i32) {
    %c0_i32 = arith.constant 0 : i32
    %c0_i32_0 = arith.constant 0 : i32
    %c0_i32_1 = arith.constant 0 : i32
    return %c0_i32, %c0_i32_0 : i32, i32
  }
  func.func @transform_2(%arg0: i32) -> (i32, i32) {
    %c0_i32 = arith.constant 0 : i32
    %c0_i32_0 = arith.constant 0 : i32
    %c0_i32_1 = arith.constant 0 : i32
    return %c0_i32, %c0_i32_0 : i32, i32
  }
  func.func @transform_3(%arg0: i32) -> (i32, i32) {
    %c0_i32 = arith.constant 0 : i32
    %c0_i32_0 = arith.constant 0 : i32
    return %arg0, %c0_i32 : i32, i32
  }
  func.func @transform_4(%arg0: i32) -> (i32, i32) {
    %c0_i32 = arith.constant 0 : i32
    %c0_i32_0 = arith.constant 0 : i32
    %c0_i32_1 = arith.constant 0 : i32
    return %c0_i32, %c0_i32_0 : i32, i32
  }
  func.func @transform_5(%arg0: i32) -> (i32, i32) {
    %c0_i32 = arith.constant 0 : i32
    %c0_i32_0 = arith.constant 0 : i32
    %c0_i32_1 = arith.constant 0 : i32
    return %c0_i32, %c0_i32_0 : i32, i32
  }
}

</mosaic_0001>

<llo_original>
// kernel: tpu_custom_call.1
$region0: #{tpu_custom_call.1}
  #allocation0 [shape = 'u32[]', space=smem, size = 0x4, offset = 0x4, fixed_abs, tag = 'smem constant byte address 0x4 - core index']
  #allocation1 [shape = 'u32[144,128]{1,0:T(1,128)}', space=vmem, size = 0x12000, scoped, tag = 'internal scratch']
  %s0 = inlined_call_operand.hbm [shape: f32[24,128], index: 0, kind: input, shape index: {}]
  %s1 = inlined_call_operand.hbm [shape: f32[128,128], index: 1, kind: input, shape index: {}]
  %s2 = inlined_call_operand.vmem [shape: f32[1,128], index: 2, kind: input, shape index: {}]
  %s3 = inlined_call_operand.hbm [shape: f32[24,128], index: 3, kind: output, shape index: {0}]
  %s4 = inlined_call_operand.hbm [shape: f32[1,128], index: 4, kind: output, shape index: {1}]
  %s5 = inlined_call_operand.hbm [shape: f32[1,128], index: 5, kind: output, shape index: {2}]
  %6 = xla_tuple %s3, %s4, %s5
  %s7 = sld [smem:[#allocation0]]
  $region73: #{tpu_custom_call.1} parent=0
    _
  %s9 = ssub.s32 1, %s7
  %s10 = scalar_select 0, %s9, %s7
  $region1: #{tpu_custom_call.1} parent=0
    #allocation2 [shape = 'u8[8192]{0}', space=vmem, size = 0x2000, scoped, tag = 'input window, operand 0']
    #allocation3 [shape = 's32[2]{0}', space=sflag, size = 0x8, scoped, tag = 'scoped memory for tpu_custom_call.1']
    #allocation4 [shape = 's32[2]{0}', space=sflag, size = 0x8, scoped, tag = 'scoped memory for tpu_custom_call.1']
    #allocation5 [shape = 'u8[65536]{0}', space=vmem, size = 0x10000, scoped, tag = 'input window, operand 1, single buffered']
    #allocation6 [shape = 's32[1]{0}', space=sflag, size = 0x4, scoped, tag = 'scoped memory for tpu_custom_call.1']
    #allocation7 [shape = 'u8[8192]{0}', space=vmem, size = 0x2000, scoped, tag = 'output window, operand 0']
    #allocation8 [shape = 'u8[512]{0}', space=vmem, size = 0x400, scoped, tag = 'output window, operand 1, single buffered']
    #allocation9 [shape = 's32[1]{0}', space=sflag, size = 0x4, scoped, tag = 'scoped memory for tpu_custom_call.1']
    #allocation10 [shape = 'u8[512]{0}', space=vmem, size = 0x400, scoped, tag = 'output window, operand 2, single buffered']
    %11 = vsyncpa [#allocation3], 0
    %s12 = scalar_lea.sflag [#allocation3], 1
    %13 = vsyncpa %s12, 0
    %14 = vsyncpa [#allocation6], 0
    %15 = vsyncpa [#allocation4], 0
    %s16 = scalar_lea.sflag [#allocation4], 1
    %17 = vsyncpa %s16, 0
    %18 = vsyncpa [#allocation9], 0
    loop: start=0, step=1, limit=5
    $region2: #{tpu_custom_call.1} parent=1 // loop_pre_header
      _
    $region3: #{tpu_custom_call.1} parent=1 // loop_header
      %s20 = sphi 0, %s24
      %p21 = scmp.ge.s32.totalorder %s20, 5
      %s30 = sphi 0, %s32
      %s33 = sphi 0, %s30
      %s34 = sphi 0, %s33
      %s50 = sphi 0, %s34
      %s54 = sphi 0, %s54
      %s56 = sphi 0, %s54
      %s57 = sphi 0, %s56
      %s71 = sphi 0, %s57
      %s75 = sphi 0, %s75
      %s77 = sphi 0, %s75
      %s78 = sphi 0, %s77
      %s92 = sphi 0, %s78
      %s98 = sphi 0, %s100
      %s101 = sphi 0, %s98
      %s102 = sphi 0, %s101
      %s118 = sphi 0, %s102
      %s122 = sphi 0, %s122
      %s124 = sphi 0, %s122
      %s125 = sphi 0, %s124
      %s139 = sphi 0, %s125
      %s143 = sphi 0, %s143
      %s145 = sphi 0, %s143
      %s146 = sphi 0, %s145
      %s160 = sphi 0, %s146
    $region4: #{tpu_custom_call.1} parent=1 // loop_header_branch
      %23 = sbr.rel (%p21) target = $region8
    $region5: #{tpu_custom_call.1} parent=1 // loop_body
      %s25 = ssub.s32 %s20, 1
      %s26 = ssub.s32 %s20, 2
      %s27 = sadd.s32 %s20, 1
      %s28 = ssub.s32 %s20, %s27
      %p29 = scmp.eq.s32.totalorder %s28, 0
      %s31 = sadd.s32 %s30, 1
      %s32 = scalar_select %p29, %s30, %s31
      %p35 = pneg %p29
      %p36 = scmp.eq.s32.totalorder %s20, 2
      %p37 = por %p35, %p36
      %p38 = scmp.ne.s32.totalorder %s30, %s33
      %p39 = scmp.eq.s32.totalorder %s20, 0
      %p40 = por %p38, %p39
      %p41 = scmp.ne.s32.totalorder %s30, %s33
      %p42 = scmp.eq.s32.totalorder %s25, 2
      %p43 = por %p41, %p42
      %p44 = scmp.ne.s32.totalorder %s33, %s34
      %p45 = scmp.eq.s32.totalorder %s25, 0
      %p46 = por %p44, %p45
      %p47 = scmp.ne.s32.totalorder %s33, %s34
      %p48 = scmp.eq.s32.totalorder %s26, 2
      %p49 = por %p47, %p48
      %p51 = scmp.ne.s32.totalorder %s34, %s50
      %p52 = scmp.eq.s32.totalorder %s26, 0
      %p53 = por %p51, %p52
      %s55 = sadd.s32 %s54, 1
      %p58 = scmp.eq.s32.totalorder %s20, 2
      %p59 = scmp.ne.s32.totalorder %s54, %s56
      %p60 = scmp.eq.s32.totalorder %s20, 0
      %p61 = por %p59, %p60
      %p62 = scmp.ne.s32.totalorder %s54, %s56
      %p63 = scmp.eq.s32.totalorder %s25, 2
      %p64 = por %p62, %p63
      %p65 = scmp.ne.s32.totalorder %s56, %s57
      %p66 = scmp.eq.s32.totalorder %s25, 0
      %p67 = por %p65, %p66
      %p68 = scmp.ne.s32.totalorder %s56, %s57
      %p69 = scmp.eq.s32.totalorder %s26, 2
      %p70 = por %p68, %p69
      %p72 = scmp.ne.s32.totalorder %s57, %s71
      %p73 = scmp.eq.s32.totalorder %s26, 0
      %p74 = por %p72, %p73
      %s76 = sadd.s32 %s75, 1
      %p79 = scmp.eq.s32.totalorder %s20, 2
      %p80 = scmp.ne.s32.totalorder %s75, %s77
      %p81 = scmp.eq.s32.totalorder %s20, 0
      %p82 = por %p80, %p81
      %p83 = scmp.ne.s32.totalorder %s75, %s77
      %p84 = scmp.eq.s32.totalorder %s25, 2
      %p85 = por %p83, %p84
      %p86 = scmp.ne.s32.totalorder %s77, %s78
      %p87 = scmp.eq.s32.totalorder %s25, 0
      %p88 = por %p86, %p87
      %p89 = scmp.ne.s32.totalorder %s77, %s78
      %p90 = scmp.eq.s32.totalorder %s26, 2
      %p91 = por %p89, %p90
      %p93 = scmp.ne.s32.totalorder %s78, %s92
      %p94 = scmp.eq.s32.totalorder %s26, 0
      %p95 = por %p93, %p94
      %s96 = ssub.s32 %s20, %s27
      %p97 = scmp.eq.s32.totalorder %s96, 0
      %s99 = sadd.s32 %s98, 1
      %s100 = scalar_select %p97, %s98, %s99
      %p103 = pneg %p97
      %p104 = scmp.eq.s32.totalorder %s20, 2
      %p105 = por %p103, %p104
      %p106 = scmp.ne.s32.totalorder %s98, %s101
      %p107 = scmp.eq.s32.totalorder %s20, 0
      %p108 = por %p106, %p107
      %p109 = scmp.ne.s32.totalorder %s98, %s101
      %p110 = scmp.eq.s32.totalorder %s25, 2
      %p111 = por %p109, %p110
      %p112 = scmp.ne.s32.totalorder %s101, %s102
      %p113 = scmp.eq.s32.totalorder %s25, 0
      %p114 = por %p112, %p113
      %p115 = scmp.ne.s32.totalorder %s101, %s102
      %p116 = scmp.eq.s32.totalorder %s26, 2
      %p117 = por %p115, %p116
      %p119 = scmp.ne.s32.totalorder %s102, %s118
      %p120 = scmp.eq.s32.totalorder %s26, 0
      %p121 = por %p119, %p120
      %s123 = sadd.s32 %s122, 1
      %p126 = scmp.eq.s32.totalorder %s20, 2
      %p127 = scmp.ne.s32.totalorder %s122, %s124
      %p128 = scmp.eq.s32.totalorder %s20, 0
      %p129 = por %p127, %p128
      %p130 = scmp.ne.s32.totalorder %s122, %s124
      %p131 = scmp.eq.s32.totalorder %s25, 2
      %p132 = por %p130, %p131
      %p133 = scmp.ne.s32.totalorder %s124, %s125
      %p134 = scmp.eq.s32.totalorder %s25, 0
      %p135 = por %p133, %p134
      %p136 = scmp.ne.s32.totalorder %s124, %s125
      %p137 = scmp.eq.s32.totalorder %s26, 2
      %p138 = por %p136, %p137
      %p140 = scmp.ne.s32.totalorder %s125, %s139
      %p141 = scmp.eq.s32.totalorder %s26, 0
      %p142 = por %p140, %p141
      %s144 = sadd.s32 %s143, 1
      %p147 = scmp.eq.s32.totalorder %s20, 2
      %p148 = scmp.ne.s32.totalorder %s143, %s145
      %p149 = scmp.eq.s32.totalorder %s20, 0
      %p150 = por %p148, %p149
      %p151 = scmp.ne.s32.totalorder %s143, %s145
      %p152 = scmp.eq.s32.totalorder %s25, 2
      %p153 = por %p151, %p152
      %p154 = scmp.ne.s32.totalorder %s145, %s146
      %p155 = scmp.eq.s32.totalorder %s25, 0
      %p156 = por %p154, %p155
      %p157 = scmp.ne.s32.totalorder %s145, %s146
      %p158 = scmp.eq.s32.totalorder %s26, 2
      %p159 = por %p157, %p158
      %p161 = scmp.ne.s32.totalorder %s146, %s160
      %p162 = scmp.eq.s32.totalorder %s26, 0
      %p163 = por %p161, %p162
      %p164 = scmp.le.s32.totalorder 1, %s20
      %p165 = scmp.lt.s32.totalorder %s20, 4
      %p166 = pnand %p164, %p165
      %p167 = pneg %p166
      // Predicated region
      $region9: #{tpu_custom_call.1} parent=5 // pred_check
        _
      $region10: #{tpu_custom_call.1} parent=5 // pred_check_branch
        %169 = sbr.rel (%p166) target = $region12
      $region11: #{tpu_custom_call.1} parent=5 // pred_region
        %s170 = ssub.s32 %s20, 1
        // Predicated region
        $region13: #{tpu_custom_call.1} parent=11 // pred_check
          %p171 = pneg %p67
        $region14: #{tpu_custom_call.1} parent=11 // pred_check_branch
          %173 = sbr.rel (%p171) target = $region16
        $region15: #{tpu_custom_call.1} parent=11 // pred_region
          %s175 = ssub.s32 2048, 2048
          %176 = vsyncadd [#allocation6], %s175
          %s177 = sshll.u32 [#allocation5], 4
          %s178 = int_to_ptr.vmem [resolvable:$true] %s177
          %183 = dma.hbm_to_vmem [thread:$0]  %s1, 2048, %s178, [#allocation6], 128, 128, 8
        $region16: #{tpu_custom_call.1} parent=11 // pred_fallthru
          _
        // Predicated region
        $region17: #{tpu_custom_call.1} parent=11 // pred_check
          %p184 = pneg %p88
        $region18: #{tpu_custom_call.1} parent=11 // pred_check_branch
          %186 = sbr.rel (%p184) target = $region20
        $region19: #{tpu_custom_call.1} parent=11 // pred_region
          _
        $region20: #{tpu_custom_call.1} parent=11 // pred_fallthru
          _
      $region12: #{tpu_custom_call.1} parent=5 // pred_fallthru
        _
      %p187 = scmp.lt.s32.totalorder %s20, 3
      // Predicated region
      $region21: #{tpu_custom_call.1} parent=5 // pred_check
        %p188 = pneg %p187
      $region22: #{tpu_custom_call.1} parent=5 // pred_check_branch
        %190 = sbr.rel (%p188) target = $region24
      $region23: #{tpu_custom_call.1} parent=5 // pred_region
        // Predicated region
        $region25: #{tpu_custom_call.1} parent=23 // pred_check
          %p191 = pneg %p40
        $region26: #{tpu_custom_call.1} parent=23 // pred_check_branch
          %193 = sbr.rel (%p191) target = $region28
        $region27: #{tpu_custom_call.1} parent=23 // pred_region
          %s194 = sand.u32 %s30, 1
          %s195 = scalar_lea.sflag [#allocation3], %s194
          %s196 = sand.u32 %s30, 1
          %s197 = smul.addr %s196, 8
          %s198 = scalar_lea.vmem [#allocation2], %s197
          %s200 = ssub.s32 128, 128
          %201 = vsyncadd %s195, %s200
          %s202 = smul.addr %s20, 128
          %s203 = scalar_lea.hbm %s0, %s202
          %s205 = sshll.u32 %s198, 4
          %s206 = int_to_ptr.vmem [resolvable:$true] %s205
          %208 = dma.hbm_to_vmem [thread:$0]  %s203, 128, %s206, %s195
        $region28: #{tpu_custom_call.1} parent=23 // pred_fallthru
          _
      $region24: #{tpu_custom_call.1} parent=5 // pred_fallthru
        _
      %p209 = scmp.le.s32.totalorder 1, %s20
      %p210 = scmp.lt.s32.totalorder %s20, 4
      %p211 = pnand %p209, %p210
      %p212 = pneg %p211
      // Predicated region
      $region29: #{tpu_custom_call.1} parent=5 // pred_check
        _
      $region30: #{tpu_custom_call.1} parent=5 // pred_check_branch
        %214 = sbr.rel (%p211) target = $region32
      $region31: #{tpu_custom_call.1} parent=5 // pred_region
        %s215 = ssub.s32 %s20, 1
        %s216 = sand.u32 %s33, 1
        %s217 = scalar_lea.sflag [#allocation3], %s216
        %s218 = sand.u32 %s33, 1
        %s219 = smul.addr %s218, 8
        %s220 = scalar_lea.vmem [#allocation2], %s219
        // Predicated region
        $region33: #{tpu_custom_call.1} parent=31 // pred_check
          %p221 = pneg %p46
        $region34: #{tpu_custom_call.1} parent=31 // pred_check_branch
          %223 = sbr.rel (%p221) target = $region36
        $region35: #{tpu_custom_call.1} parent=31 // pred_region
          %224 = dma.done %s217, 128
        $region36: #{tpu_custom_call.1} parent=31 // pred_fallthru
          _
        // Predicated region
        $region37: #{tpu_custom_call.1} parent=31 // pred_check
          %p225 = pneg %p67
        $region38: #{tpu_custom_call.1} parent=31 // pred_check_branch
          %227 = sbr.rel (%p225) target = $region40
        $region39: #{tpu_custom_call.1} parent=31 // pred_region
          %228 = dma.done [#allocation6], 2048
        $region40: #{tpu_custom_call.1} parent=31 // pred_fallthru
          _
        %s229 = sand.u32 %s33, 1
        %s230 = scalar_lea.sflag [#allocation3], %s229
        %s231 = sand.u32 %s33, 1
        %s232 = smul.addr %s231, 8
        %s233 = scalar_lea.vmem [#allocation2], %s232
        %p234 = pneg %p46
        %p235 = pneg %p43
        %p236 = pneg %p67
        %p237 = pneg %p64
        %p238 = pneg %p88
        %p239 = pneg %p85
        %p240 = pneg %p114
        %p241 = pneg %p111
        %s242 = sand.u32 %s101, 1
        %s243 = scalar_lea.sflag [#allocation4], %s242
        %s244 = sand.u32 %s101, 1
        %s245 = smul.addr %s244, 8
        %s246 = scalar_lea.vmem [#allocation7], %s245
        %p247 = pneg %p135
        %p248 = pneg %p132
        %p249 = pneg %p156
        %p250 = pneg %p153
        %v251 = vld [vmem:[%s220] sm:$0xff]
        %v252 = vld [vmem:[#allocation5] sm:$0xff]
        %v253 = vld [vmem:[#allocation5 + $0x8] sm:$0xff]
        %v254 = vld [vmem:[#allocation5 + $0x10] sm:$0xff]
        %v255 = vld [vmem:[#allocation5 + $0x18] sm:$0xff]
        %v256 = vld [vmem:[#allocation5 + $0x20] sm:$0xff]
        %v257 = vld [vmem:[#allocation5 + $0x28] sm:$0xff]
        %v258 = vld [vmem:[#allocation5 + $0x30] sm:$0xff]
        %v259 = vld [vmem:[#allocation5 + $0x38] sm:$0xff]
        %v260 = vld [vmem:[#allocation5 + $0x40] sm:$0xff]
        %v261 = vld [vmem:[#allocation5 + $0x48] sm:$0xff]
        %v262 = vld [vmem:[#allocation5 + $0x50] sm:$0xff]
        %v263 = vld [vmem:[#allocation5 + $0x58] sm:$0xff]
        %v264 = vld [vmem:[#allocation5 + $0x60] sm:$0xff]
        %v265 = vld [vmem:[#allocation5 + $0x68] sm:$0xff]
        %v266 = vld [vmem:[#allocation5 + $0x70] sm:$0xff]
        %v267 = vld [vmem:[#allocation5 + $0x78] sm:$0xff]
        %v268 = vld [vmem:[%s2] sm:$0x1]
        %v270 = vlaneseq
        %v271 = vshrl.u32 %v270, 7
        %v272 = vsub.s32 0, %v271
        %v273 = vrot.slane %v268, %v272
        %275 = vmatprep.subr.mxu0 0.0
        %276 = vmatpush1.msra.mxu0 %v252
        %277 = vmatprep.subr.mxu0 0.0
        %278 = vmatpush1.msra.mxu0 %v253
        %279 = vmatprep.subr.mxu0 0.0
        %280 = vmatpush1.msra.mxu0 %v254
        %281 = vmatprep.subr.mxu0 0.0
        %282 = vmatpush1.msra.mxu0 %v255
        %283 = vmatprep.subr.mxu0 0.0
        %284 = vmatpush1.msra.mxu0 %v256
        %285 = vmatprep.subr.mxu0 0.0
        %286 = vmatpush1.msra.mxu0 %v257
        %287 = vmatprep.subr.mxu0 0.0
        %288 = vmatpush1.msra.mxu0 %v258
        %289 = vmatprep.subr.mxu0 0.0
        %290 = vmatpush1.msra.mxu0 %v259
        %291 = vmatprep.subr.mxu0 0.0
        %292 = vmatpush1.msra.mxu0 %v260
        %293 = vmatprep.subr.mxu0 0.0
        %294 = vmatpush1.msra.mxu0 %v261
        %295 = vmatprep.subr.mxu0 0.0
        %296 = vmatpush1.msra.mxu0 %v262
        %297 = vmatprep.subr.mxu0 0.0
        %298 = vmatpush1.msra.mxu0 %v263
        %299 = vmatprep.subr.mxu0 0.0
        %300 = vmatpush1.msra.mxu0 %v264
        %301 = vmatprep.subr.mxu0 0.0
        %302 = vmatpush1.msra.mxu0 %v265
        %303 = vmatprep.subr.mxu0 0.0
        %304 = vmatpush1.msra.mxu0 %v266
        %305 = vmatprep.subr.mxu0 0.0
        %306 = vmatpush1.msra.mxu0 %v267
        %307 = vmatprep.subr.mxu0 0.0
        %308 = vmatpush1.msra.mxu0 0.0
        %309 = vmatprep.subr.mxu0 0.0
        %310 = vmatpush1.msra.mxu0 0.0
        %311 = vmatprep.subr.mxu0 0.0
        %312 = vmatpush1.msra.mxu0 0.0
        %313 = vmatprep.subr.mxu0 0.0
        %314 = vmatpush1.msra.mxu0 0.0
        %315 = vmatprep.subr.mxu0 0.0
        %316 = vmatpush1.msra.mxu0 0.0
        %317 = vmatprep.subr.mxu0 0.0
        %318 = vmatpush1.msra.mxu0 0.0
        %319 = vmatprep.subr.mxu0 0.0
        %320 = vmatpush1.msra.mxu0 0.0
        %321 = vmatprep.subr.mxu0 0.0
        %322 = vmatpush1.msra.mxu0 0.0
        %323 = vmatprep.subr.mxu0 0.0
        %324 = vmatpush1.msra.mxu0 0.0
        %325 = vmatprep.subr.mxu0 0.0
        %326 = vmatpush1.msra.mxu0 0.0
        %327 = vmatprep.subr.mxu0 0.0
        %328 = vmatpush1.msra.mxu0 0.0
        %329 = vmatprep.subr.mxu0 0.0
        %330 = vmatpush1.msra.mxu0 0.0
        %331 = vmatprep.subr.mxu0 0.0
        %332 = vmatpush1.msra.mxu0 0.0
        %333 = vmatprep.subr.mxu0 0.0
        %334 = vmatpush1.msra.mxu0 0.0
        %335 = vmatprep.subr.mxu0 0.0
        %336 = vmatpush1.msra.mxu0 0.0
        %337 = vmatprep.subr.mxu0 0.0
        %338 = vmatpush1.msra.mxu0 0.0
        %339 = vmatprep.mubr.f32.mxu0 0.0
        %340 = vmatmul.mubr.f32.gmra.mrb[0].mxu0 %v251
        %v341 = vpop.f32.mrb[0].mxu0
        %v342 = vadd.f32 %v273, %v341
        %v343 = vpop.f32.mrb[0].mxu0
        %344 = vdwg.mxu0
        %v345 = vmax.f32 %v342, 0.0
        %s346 = smul.u32 %s25, 8
        %v347 = vlaneseq
        %v348 = vshrl.u32 %v347, 7
        %v349 = vstv %s346
        %v350 = vadd.s32 %v349, %v348
        %vm351 = vcmp.lt.s32.totalorder %v350, 20
        %v352 = vsel %vm351, 1, 0
        %vm353 = vcmp.eq.s32.totalorder %v352, 1
        %v354 = vsel %vm353, %v345, 0.0
        %355 = vst [vmem:[%s246] sm:$0xff] %v354
        %p356 = scmp.eq.s32.totalorder %s25, 0
        // Predicated region
        $region41: #{tpu_custom_call.1} parent=31 // pred_check
          %p357 = pneg %p356
        $region42: #{tpu_custom_call.1} parent=31 // pred_check_branch
          %359 = sbr.rel (%p357) target = $region44
        $region43: #{tpu_custom_call.1} parent=31 // pred_region
          %360 = vst [vmem:[#allocation8] sm:$0x1] 0.0
          %361 = vst [vmem:[#allocation10] sm:$0x1] 0.0
        $region44: #{tpu_custom_call.1} parent=31 // pred_fallthru
          _
        %v362 = vld [vmem:[#allocation8] sm:$0x1]
        %v363 = vrot.slane %v354, 4
        %v364 = vadd.f32 %v354, %v363
        %v365 = vrot.slane %v364, 2
        %v366 = vadd.f32 %v364, %v365
        %v367 = vrot.slane %v366, 1
        %v368 = vadd.f32 %v366, %v367
        %v369 = vadd.f32 %v362, %v368
        %370 = vst [vmem:[#allocation8] sm:$0x1] %v369
        %v371 = vld [vmem:[#allocation10] sm:$0x1]
        %v372 = vmul.f32 %v354, %v354
        %v373 = vrot.slane %v372, 4
        %v374 = vadd.f32 %v372, %v373
        %v375 = vrot.slane %v374, 2
        %v376 = vadd.f32 %v374, %v375
        %v377 = vrot.slane %v376, 1
        %v378 = vadd.f32 %v376, %v377
        %v379 = vadd.f32 %v371, %v378
        %380 = vst [vmem:[#allocation10] sm:$0x1] %v379
        %s381 = sand.u32 %s101, 1
        %s382 = scalar_lea.sflag [#allocation4], %s381
        %s383 = sand.u32 %s101, 1
        %s384 = smul.addr %s383, 8
        %s385 = scalar_lea.vmem [#allocation7], %s384
        // Predicated region
        $region45: #{tpu_custom_call.1} parent=31 // pred_check
          %p386 = pneg %p111
        $region46: #{tpu_custom_call.1} parent=31 // pred_check_branch
          %388 = sbr.rel (%p386) target = $region48
        $region47: #{tpu_custom_call.1} parent=31 // pred_region
          %s390 = ssub.s32 128, 128
          %391 = vsyncadd %s382, %s390
          %s392 = smul.addr %s25, 128
          %s393 = scalar_lea.hbm %s3, %s392
          %s395 = sshll.u32 %s385, 4
          %s396 = int_to_ptr.vmem [resolvable:$true] %s395
          %398 = dma.vmem_to_hbm [thread:$0]  %s396, 128, %s393, %s382
        $region48: #{tpu_custom_call.1} parent=31 // pred_fallthru
          _
        // Predicated region
        $region49: #{tpu_custom_call.1} parent=31 // pred_check
          %p399 = pneg %p132
        $region50: #{tpu_custom_call.1} parent=31 // pred_check_branch
          %401 = sbr.rel (%p399) target = $region52
        $region51: #{tpu_custom_call.1} parent=31 // pred_region
          %s403 = ssub.s32 16, 16
          %404 = vsyncadd [#allocation9], %s403
          %s406 = sshll.u32 [#allocation8], 4
          %s407 = int_to_ptr.vmem [resolvable:$true] %s406
          %409 = dma.vmem_to_hbm [thread:$0]  %s407, 16, %s4, [#allocation9]
        $region52: #{tpu_custom_call.1} parent=31 // pred_fallthru
          _
        // Predicated region
        $region53: #{tpu_custom_call.1} parent=31 // pred_check
          %p410 = pneg %p153
        $region54: #{tpu_custom_call.1} parent=31 // pred_check_branch
          %412 = sbr.rel (%p410) target = $region56
        $region55: #{tpu_custom_call.1} parent=31 // pred_region
          %s414 = ssub.s32 16, 16
          %415 = vsyncadd [#allocation9], %s414
          %s417 = sshll.u32 [#allocation10], 4
          %s418 = int_to_ptr.vmem [resolvable:$true] %s417
          %420 = dma.vmem_to_hbm [thread:$0]  %s418, 16, %s5, [#allocation9]
        $region56: #{tpu_custom_call.1} parent=31 // pred_fallthru
          _
        // Predicated region
        $region57: #{tpu_custom_call.1} parent=31 // pred_check
          %p421 = pneg %p132
        $region58: #{tpu_custom_call.1} parent=31 // pred_check_branch
          %423 = sbr.rel (%p421) target = $region60
        $region59: #{tpu_custom_call.1} parent=31 // pred_region
          %424 = dma.done [#allocation9], 16
        $region60: #{tpu_custom_call.1} parent=31 // pred_fallthru
          _
        // Predicated region
        $region61: #{tpu_custom_call.1} parent=31 // pred_check
          %p425 = pneg %p153
        $region62: #{tpu_custom_call.1} parent=31 // pred_check_branch
          %427 = sbr.rel (%p425) target = $region64
        $region63: #{tpu_custom_call.1} parent=31 // pred_region
          %428 = dma.done [#allocation9], 16
        $region64: #{tpu_custom_call.1} parent=31 // pred_fallthru
          _
      $region32: #{tpu_custom_call.1} parent=5 // pred_fallthru
        _
      %p429 = scmp.le.s32.totalorder 2, %s20
      // Predicated region
      $region65: #{tpu_custom_call.1} parent=5 // pred_check
        %p430 = pneg %p429
      $region66: #{tpu_custom_call.1} parent=5 // pred_check_branch
        %432 = sbr.rel (%p430) target = $region68
      $region67: #{tpu_custom_call.1} parent=5 // pred_region
        %s433 = ssub.s32 %s20, 2
        // Predicated region
        $region69: #{tpu_custom_call.1} parent=67 // pred_check
          %p434 = pneg %p117
        $region70: #{tpu_custom_call.1} parent=67 // pred_check_branch
          %436 = sbr.rel (%p434) target = $region72
        $region71: #{tpu_custom_call.1} parent=67 // pred_region
          %s437 = sand.u32 %s102, 1
          %s438 = scalar_lea.sflag [#allocation4], %s437
          %s439 = sand.u32 %s102, 1
          %s440 = smul.addr %s439, 8
          %s441 = scalar_lea.vmem [#allocation7], %s440
          %442 = dma.done %s438, 128
        $region72: #{tpu_custom_call.1} parent=67 // pred_fallthru
          _
      $region68: #{tpu_custom_call.1} parent=5 // pred_fallthru
        _
    $region6: #{tpu_custom_call.1} parent=1 // loop_footer
      %s24 = sadd.s32 1, %s20
    $region7: #{tpu_custom_call.1} parent=1 // loop_footer_branch
      %19 = sbr.rel target = $region3
    $region8: #{tpu_custom_call.1} parent=1 // loop_exit
      _
    %443 = vsyncpa [#allocation3], 1
    %s444 = scalar_lea.sflag [#allocation3], 1
    %445 = vsyncpa %s444, 1
    %446 = vsyncpa [#allocation6], 1
    %447 = vsyncpa [#allocation4], 1
    %s448 = scalar_lea.sflag [#allocation4], 1
    %449 = vsyncpa %s448, 1
    %450 = vsyncpa [#allocation9], 1

</llo_original>
